<compile_context>
chip_gen: v7x
topology: tpu7x:2x2x1
jax: 0.10.0
libtpu: 0.0.40
codegen_flags: <defaults>
</compile_context>

<pallas_src>
import jax
import jax.numpy as jnp
from jax.experimental import pallas as pl
from jax.experimental.pallas import tpu as pltpu

NUM_CLASSES = 10
IN_LEN = 40
POOL_OUT = IN_LEN // 2                # 20
KSIZE = 3
CONV_CH = 25
CONV_OUT_LEN = POOL_OUT - KSIZE + 1   # 18
FLAT = CONV_CH * CONV_OUT_LEN         # 450
H1, H2 = 128, 64

# Padded, lane-friendly dimensions used inside the kernel.
FLAT_PAD = 512        # conv-output features 450 -> 512
H2_PAD = 128          # second hidden 64 -> 128
OUT_PAD = 128         # classes 10 -> 128
MAX_TB = 1024         # max batch rows per grid step


def _gesture_kernel(p_ref, wc_ref, bc_ref, w1_ref, b1_ref,
                    w2_ref, b2_ref, w3_ref, b3_ref, out_ref):
    pooled = p_ref[...]                                          # (TB, 20) f32

    # Conv1d(1->25, k=3) + bias + ReLU expressed as a (20 x 512) f32 matmul
    # (im2col folded into the weight; channel-major flatten order).
    h = jnp.dot(pooled, wc_ref[...],
                preferred_element_type=jnp.float32) + bc_ref[...]
    h = jnp.maximum(h, 0.0).astype(jnp.bfloat16)                 # (TB, 512)

    h = jnp.dot(h, w1_ref[...],
                preferred_element_type=jnp.float32) + b1_ref[...]
    h = jnp.maximum(h, 0.0).astype(jnp.bfloat16)                 # (TB, 128)

    h = jnp.dot(h, w2_ref[...],
                preferred_element_type=jnp.float32) + b2_ref[...]
    h = jnp.maximum(h, 0.0).astype(jnp.bfloat16)                 # (TB, 128), cols >= 64 are 0

    out = jnp.dot(h, w3_ref[...],
                  preferred_element_type=jnp.float32) + b3_ref[...]
    out_ref[...] = out.astype(jnp.bfloat16)                      # (TB, 128) "wide" head


def _conv_as_matmul(w_conv, b_conv):
    """Fold conv1d (25,1,3) into a (POOL_OUT, FLAT) matrix matching PyTorch's
    channel-major flatten: feature index f = c * CONV_OUT_LEN + t."""
    w = w_conv[:, 0, :]                                          # (25, 3)
    wfull = jnp.zeros((CONV_CH, CONV_OUT_LEN, POOL_OUT), jnp.float32)
    for k in range(KSIZE):
        shift = jnp.eye(CONV_OUT_LEN, POOL_OUT, k, dtype=jnp.float32)  # shift[t, t+k] = 1
        wfull = wfull + w[:, k][:, None, None] * shift[None]
    wc_eff = wfull.reshape(FLAT, POOL_OUT).T                     # (20, 450)
    bc_eff = jnp.repeat(b_conv, CONV_OUT_LEN)                    # (450,)
    return wc_eff, bc_eff


def prepare_params(params):
    """One-time repack of PyTorch-shaped parameters into padded, lane-dense,
    kernel-ready operands.  Layer-1 weight stays f32 (accuracy, K tiny);
    layers 2-4 weights are bf16 for the MXU; biases stay f32."""
    wc_eff, bc_eff = _conv_as_matmul(params["wc"], params["bc"])

    wc = jnp.zeros((POOL_OUT, FLAT_PAD), jnp.float32).at[:, :FLAT].set(wc_eff)
    bc = jnp.zeros((1, FLAT_PAD), jnp.float32).at[0, :FLAT].set(bc_eff)

    w1 = jnp.zeros((FLAT_PAD, H1), jnp.float32).at[:FLAT, :].set(params["w1"].T)
    b1 = params["b1"].reshape(1, H1).astype(jnp.float32)

    w2 = jnp.zeros((H1, H2_PAD), jnp.float32).at[:, :H2].set(params["w2"].T)
    b2 = jnp.zeros((1, H2_PAD), jnp.float32).at[0, :H2].set(params["b2"])

    w3 = jnp.zeros((H2_PAD, OUT_PAD), jnp.float32).at[:H2, :NUM_CLASSES].set(params["w3"].T)
    b3 = jnp.zeros((1, OUT_PAD), jnp.float32).at[0, :NUM_CLASSES].set(params["b3"])

    bf = lambda a: a.astype(jnp.bfloat16)
    return (wc, bc, bf(w1), b1, bf(w2), b2, bf(w3), b3)


def _round_up(n, m):
    return (n + m - 1) // m * m


def _tpu_generation():
    try:
        return jax.devices()[0].device_kind.lower()
    except Exception:
        return ""


def _choose_tb(n):
    """Batch tile: up to MAX_TB rows, multiple of 8.  Single grid step when
    the batch fits (v5e/v6e: 1 TC, grid is a serial loop).  On v7x keep >= 2
    steps so the 'parallel' batch axis can shard across its two TCs."""
    n8 = _round_up(max(n, 1), 8)
    tb = min(MAX_TB, n8)
    gen = _tpu_generation()
    if (("v7" in gen) or ("7x" in gen)) and n8 > 8:
        tb = min(tb, max(8, _round_up(pl.cdiv(n8, 2), 8)))
    return tb


def gesture_forward(x, prepared_params):
    """x: (N, 1, 40) NCW, identical to the PyTorch module's input.
    prepared_params: output of prepare_params()."""
    n = x.shape[0]
    tb = _choose_tb(n)
    n_pad = _round_up(max(n, tb), tb)

    # MaxPool1d(2,2) as one fused XLA reduce: (N,40) f32 -> (N,20) f32.
    pooled = jnp.max(x[:, 0, :].astype(jnp.float32).reshape(n, POOL_OUT, 2), axis=-1)
    if n_pad != n:
        pooled = jnp.pad(pooled, ((0, n_pad - n), (0, 0)))

    def const_spec(arr):
        nd = arr.ndim
        return pl.BlockSpec(arr.shape, lambda i, _nd=nd: (0,) * _nd)

    weight_bytes = sum(int(a.size) * a.dtype.itemsize for a in prepared_params)
    cost = pl.CostEstimate(
        flops=2 * n_pad * (POOL_OUT * FLAT_PAD + FLAT_PAD * H1
                           + H1 * H2_PAD + H2_PAD * OUT_PAD),
        transcendentals=0,
        bytes_accessed=n_pad * (POOL_OUT * 4 + OUT_PAD * 2) + weight_bytes,
    )

    out = pl.pallas_call(
        _gesture_kernel,
        out_shape=jax.ShapeDtypeStruct((n_pad, OUT_PAD), jnp.bfloat16),
        grid=(n_pad // tb,),
        in_specs=[pl.BlockSpec((tb, POOL_OUT), lambda i: (i, 0))]
                 + [const_spec(a) for a in prepared_params],
        out_specs=pl.BlockSpec((tb, OUT_PAD), lambda i: (i, 0)),
        compiler_params=pltpu.CompilerParams(dimension_semantics=("parallel",)),
        cost_estimate=cost,
    )(pooled, *prepared_params)

    return out[:n, :NUM_CLASSES].astype(jnp.float32)


def init_params(key):
    """Deterministic init; PyTorch-style U(-1/sqrt(fan_in), 1/sqrt(fan_in)),
    with PyTorch parameter shapes (Linear weights are (out, in))."""
    ks = jax.random.split(key, 8)

    def uinit(k, shape, fan_in):
        bound = 1.0 / (fan_in ** 0.5)
        return jax.random.uniform(k, shape, jnp.float32, -bound, bound)

    return {
        "wc": uinit(ks[0], (CONV_CH, 1, KSIZE), KSIZE),
        "bc": uinit(ks[1], (CONV_CH,), KSIZE),
        "w1": uinit(ks[2], (H1, FLAT), FLAT),
        "b1": uinit(ks[3], (H1,), FLAT),
        "w2": uinit(ks[4], (H2, H1), H1),
        "b2": uinit(ks[5], (H2,), H1),
        "w3": uinit(ks[6], (NUM_CLASSES, H2), H2),
        "b3": uinit(ks[7], (NUM_CLASSES,), H2),
    }


def reference_forward(x, params):
    """Pure-JAX f32 reference mirroring the PyTorch forward (eval mode)."""
    n = x.shape[0]
    xw = x[:, 0, :].astype(jnp.float32)
    pooled = xw.reshape(n, POOL_OUT, 2).max(-1)                  # (N, 20)
    w = params["wc"][:, 0, :]                                    # (25, 3)
    conv = jnp.stack([pooled[:, t:t + KSIZE] @ w.T for t in range(CONV_OUT_LEN)],
                     axis=2)                                     # (N, 25, 18)
    conv = jnp.maximum(conv + params["bc"][None, :, None], 0.0)
    h = conv.reshape(n, FLAT)
    h = jnp.maximum(h @ params["w1"].T + params["b1"], 0.0)
    h = jnp.maximum(h @ params["w2"].T + params["b2"], 0.0)
    return h @ params["w3"].T + params["b3"]


if __name__ == "__main__":
    key = jax.random.PRNGKey(0)
    k_x, k_p = jax.random.split(key)

    batch = 6                       # deliberately not a multiple of the tile
    x = jax.random.normal(k_x, (batch, 1, IN_LEN), dtype=jnp.float32)
    params = init_params(k_p)

    prepared = prepare_params(params)       # one-time weight repack (off hot path)

    fwd = jax.jit(gesture_forward)
    out = jax.block_until_ready(fwd(x, prepared))

    ref = reference_forward(x, params)
    assert out.shape == (batch, NUM_CLASSES)
    max_err = float(jnp.max(jnp.abs(out - ref)))
    # bf16 MXU matmuls (layers 2-4) + bf16 output store -> small deviation.
    assert jnp.allclose(out, ref, atol=5e-2, rtol=5e-2), f"mismatch vs reference (max err {max_err})"

    print("KERNEL_OK")
</pallas_src>

<mosaic_0001>
module attributes {stable_mosaic.version = 11 : i64} {
  func.func @_gesture_kernel(%arg0: i32, %arg1: memref<8x20xf32, #tpu.memory_space<vmem>>, %arg2: memref<20x512xf32, #tpu.memory_space<vmem>>, %arg3: memref<1x512xf32, #tpu.memory_space<vmem>>, %arg4: memref<512x128xbf16, #tpu.memory_space<vmem>>, %arg5: memref<1x128xf32, #tpu.memory_space<vmem>>, %arg6: memref<128x128xbf16, #tpu.memory_space<vmem>>, %arg7: memref<1x128xf32, #tpu.memory_space<vmem>>, %arg8: memref<128x128xbf16, #tpu.memory_space<vmem>>, %arg9: memref<1x128xf32, #tpu.memory_space<vmem>>, %arg10: memref<8x128xbf16, #tpu.memory_space<vmem>>) attributes {dimension_semantics = [#tpu.dimension_semantics<parallel>], iteration_bounds = array<i64: 1>, scalar_prefetch = 0 : i64, scratch_operands = 0 : i64, tpu.core_type = #tpu.core_type<tc>, window_params = [{transform_indices = @transform_0, window_bounds = array<i64: 8, 20>}, {pipeline_mode = #tpu.pipeline_mode<synchronous>, transform_indices = @transform_1, window_bounds = array<i64: 20, 512>}, {pipeline_mode = #tpu.pipeline_mode<synchronous>, transform_indices = @transform_2, window_bounds = array<i64: 1, 512>}, {pipeline_mode = #tpu.pipeline_mode<synchronous>, transform_indices = @transform_3, window_bounds = array<i64: 512, 128>}, {pipeline_mode = #tpu.pipeline_mode<synchronous>, transform_indices = @transform_4, window_bounds = array<i64: 1, 128>}, {pipeline_mode = #tpu.pipeline_mode<synchronous>, transform_indices = @transform_5, window_bounds = array<i64: 128, 128>}, {pipeline_mode = #tpu.pipeline_mode<synchronous>, transform_indices = @transform_6, window_bounds = array<i64: 1, 128>}, {pipeline_mode = #tpu.pipeline_mode<synchronous>, transform_indices = @transform_7, window_bounds = array<i64: 128, 128>}, {pipeline_mode = #tpu.pipeline_mode<synchronous>, transform_indices = @transform_8, window_bounds = array<i64: 1, 128>}, {transform_indices = @transform_9, window_bounds = array<i64: 8, 128>}]} {
    %c0 = arith.constant 0 : index
    %c0_0 = arith.constant 0 : index
    %0 = vector.load %arg1[%c0, %c0_0] : memref<8x20xf32, #tpu.memory_space<vmem>>, vector<8x20xf32>
    %c0_1 = arith.constant 0 : index
    %c0_2 = arith.constant 0 : index
    %1 = vector.load %arg2[%c0_1, %c0_2] : memref<20x512xf32, #tpu.memory_space<vmem>>, vector<20x512xf32>
    %cst = arith.constant dense<0.000000e+00> : vector<8x512xf32>
    %2 = tpu.matmul %0, %1, %cst {dimension_numbers = #tpu.dot_dimension_numbers<[1], [0], [0], [1], [0, 0, 1, 1], [], []>} : vector<8x20xf32>, vector<20x512xf32>, vector<8x512xf32> -> vector<8x512xf32>
    %c0_3 = arith.constant 0 : index
    %c0_4 = arith.constant 0 : index
    %3 = vector.load %arg3[%c0_3, %c0_4] : memref<1x512xf32, #tpu.memory_space<vmem>>, vector<1x512xf32>
    %4 = vector.broadcast %3 : vector<1x512xf32> to vector<8x512xf32>
    %5 = arith.addf %2, %4 : vector<8x512xf32>
    %cst_5 = arith.constant 0.000000e+00 : f32
    %6 = vector.broadcast %cst_5 : f32 to vector<8x512xf32>
    %7 = arith.maximumf %5, %6 : vector<8x512xf32>
    %8 = arith.truncf %7 : vector<8x512xf32> to vector<8x512xbf16>
    %c0_6 = arith.constant 0 : index
    %c0_7 = arith.constant 0 : index
    %9 = vector.load %arg4[%c0_6, %c0_7] : memref<512x128xbf16, #tpu.memory_space<vmem>>, vector<512x128xbf16>
    %cst_8 = arith.constant dense<0.000000e+00> : vector<8x128xf32>
    %10 = tpu.matmul %8, %9, %cst_8 {dimension_numbers = #tpu.dot_dimension_numbers<[1], [0], [0], [1], [0, 0, 1, 1], [], []>} : vector<8x512xbf16>, vector<512x128xbf16>, vector<8x128xf32> -> vector<8x128xf32>
    %c0_9 = arith.constant 0 : index
    %c0_10 = arith.constant 0 : index
    %11 = vector.load %arg5[%c0_9, %c0_10] : memref<1x128xf32, #tpu.memory_space<vmem>>, vector<1x128xf32>
    %12 = vector.broadcast %11 : vector<1x128xf32> to vector<8x128xf32>
    %13 = arith.addf %10, %12 : vector<8x128xf32>
    %cst_11 = arith.constant 0.000000e+00 : f32
    %14 = vector.broadcast %cst_11 : f32 to vector<8x128xf32>
    %15 = arith.maximumf %13, %14 : vector<8x128xf32>
    %16 = arith.truncf %15 : vector<8x128xf32> to vector<8x128xbf16>
    %c0_12 = arith.constant 0 : index
    %c0_13 = arith.constant 0 : index
    %17 = vector.load %arg6[%c0_12, %c0_13] : memref<128x128xbf16, #tpu.memory_space<vmem>>, vector<128x128xbf16>
    %cst_14 = arith.constant dense<0.000000e+00> : vector<8x128xf32>
    %18 = tpu.matmul %16, %17, %cst_14 {dimension_numbers = #tpu.dot_dimension_numbers<[1], [0], [0], [1], [0, 0, 1, 1], [], []>} : vector<8x128xbf16>, vector<128x128xbf16>, vector<8x128xf32> -> vector<8x128xf32>
    %c0_15 = arith.constant 0 : index
    %c0_16 = arith.constant 0 : index
    %19 = vector.load %arg7[%c0_15, %c0_16] : memref<1x128xf32, #tpu.memory_space<vmem>>, vector<1x128xf32>
    %20 = vector.broadcast %19 : vector<1x128xf32> to vector<8x128xf32>
    %21 = arith.addf %18, %20 : vector<8x128xf32>
    %cst_17 = arith.constant 0.000000e+00 : f32
    %22 = vector.broadcast %cst_17 : f32 to vector<8x128xf32>
    %23 = arith.maximumf %21, %22 : vector<8x128xf32>
    %24 = arith.truncf %23 : vector<8x128xf32> to vector<8x128xbf16>
    %c0_18 = arith.constant 0 : index
    %c0_19 = arith.constant 0 : index
    %25 = vector.load %arg8[%c0_18, %c0_19] : memref<128x128xbf16, #tpu.memory_space<vmem>>, vector<128x128xbf16>
    %cst_20 = arith.constant dense<0.000000e+00> : vector<8x128xf32>
    %26 = tpu.matmul %24, %25, %cst_20 {dimension_numbers = #tpu.dot_dimension_numbers<[1], [0], [0], [1], [0, 0, 1, 1], [], []>} : vector<8x128xbf16>, vector<128x128xbf16>, vector<8x128xf32> -> vector<8x128xf32>
    %c0_21 = arith.constant 0 : index
    %c0_22 = arith.constant 0 : index
    %27 = vector.load %arg9[%c0_21, %c0_22] : memref<1x128xf32, #tpu.memory_space<vmem>>, vector<1x128xf32>
    %28 = vector.broadcast %27 : vector<1x128xf32> to vector<8x128xf32>
    %29 = arith.addf %26, %28 : vector<8x128xf32>
    %30 = arith.truncf %29 : vector<8x128xf32> to vector<8x128xbf16>
    %c0_23 = arith.constant 0 : index
    %c0_24 = arith.constant 0 : index
    %31 = vector.load %arg10[%c0_23, %c0_24] : memref<8x128xbf16, #tpu.memory_space<vmem>>, vector<8x128xbf16>
    tpu.vector_store %arg10[%c0_23, %c0_24], %30 {strides = array<i32>} : memref<8x128xbf16, #tpu.memory_space<vmem>>, vector<8x128xbf16>,
    return
  }
  func.func @transform_0(%arg0: i32) -> (i32, i32) {
    %c0_i32 = arith.constant 0 : i32
    %c0_i32_0 = arith.constant 0 : i32
    return %arg0, %c0_i32 : i32, i32
  }
  func.func @transform_1(%arg0: i32) -> (i32, i32) {
    %c0_i32 = arith.constant 0 : i32
    %c0_i32_0 = arith.constant 0 : i32
    %c0_i32_1 = arith.constant 0 : i32
    return %c0_i32, %c0_i32_0 : i32, i32
  }
  func.func @transform_2(%arg0: i32) -> (i32, i32) {
    %c0_i32 = arith.constant 0 : i32
    %c0_i32_0 = arith.constant 0 : i32
    %c0_i32_1 = arith.constant 0 : i32
    return %c0_i32, %c0_i32_0 : i32, i32
  }
  func.func @transform_3(%arg0: i32) -> (i32, i32) {
    %c0_i32 = arith.constant 0 : i32
    %c0_i32_0 = arith.constant 0 : i32
    %c0_i32_1 = arith.constant 0 : i32
    return %c0_i32, %c0_i32_0 : i32, i32
  }
  func.func @transform_4(%arg0: i32) -> (i32, i32) {
    %c0_i32 = arith.constant 0 : i32
    %c0_i32_0 = arith.constant 0 : i32
    %c0_i32_1 = arith.constant 0 : i32
    return %c0_i32, %c0_i32_0 : i32, i32
  }
  func.func @transform_5(%arg0: i32) -> (i32, i32) {
    %c0_i32 = arith.constant 0 : i32
    %c0_i32_0 = arith.constant 0 : i32
    %c0_i32_1 = arith.constant 0 : i32
    return %c0_i32, %c0_i32_0 : i32, i32
  }
  func.func @transform_6(%arg0: i32) -> (i32, i32) {
    %c0_i32 = arith.constant 0 : i32
    %c0_i32_0 = arith.constant 0 : i32
    %c0_i32_1 = arith.constant 0 : i32
    return %c0_i32, %c0_i32_0 : i32, i32
  }
  func.func @transform_7(%arg0: i32) -> (i32, i32) {
    %c0_i32 = arith.constant 0 : i32
    %c0_i32_0 = arith.constant 0 : i32
    %c0_i32_1 = arith.constant 0 : i32
    return %c0_i32, %c0_i32_0 : i32, i32
  }
  func.func @transform_8(%arg0: i32) -> (i32, i32) {
    %c0_i32 = arith.constant 0 : i32
    %c0_i32_0 = arith.constant 0 : i32
    %c0_i32_1 = arith.constant 0 : i32
    return %c0_i32, %c0_i32_0 : i32, i32
  }
  func.func @transform_9(%arg0: i32) -> (i32, i32) {
    %c0_i32 = arith.constant 0 : i32
    %c0_i32_0 = arith.constant 0 : i32
    return %arg0, %c0_i32 : i32, i32
  }
}

</mosaic_0001>

<llo_original>
// kernel: gesture_forward.1
$region0: #{gesture_forward.1}
  #allocation0 [shape = 'u32[]', space=smem, size = 0x4, offset = 0x4, fixed_abs, tag = 'smem constant byte address 0x4 - core index']
  #allocation1 [shape = 'u32[144,128]{1,0:T(1,128)}', space=vmem, size = 0x12000, scoped, tag = 'internal scratch']
  %s0 = inlined_call_operand.vmem [shape: f32[8,20], index: 0, kind: input, shape index: {}]
  %s1 = inlined_call_operand.vmem [shape: f32[20,512], index: 1, kind: input, shape index: {}]
  %s2 = inlined_call_operand.vmem [shape: f32[1,512], index: 2, kind: input, shape index: {}]
  %s3 = inlined_call_operand.hbm [shape: bf16[512,128], index: 3, kind: input, shape index: {}]
  %s4 = inlined_call_operand.vmem [shape: f32[1,128], index: 4, kind: input, shape index: {}]
  %s5 = inlined_call_operand.vmem [shape: bf16[128,128], index: 5, kind: input, shape index: {}]
  %s6 = inlined_call_operand.vmem [shape: f32[1,128], index: 6, kind: input, shape index: {}]
  %s7 = inlined_call_operand.hbm [shape: bf16[128,128], index: 7, kind: input, shape index: {}]
  %s8 = inlined_call_operand.vmem [shape: f32[1,128], index: 8, kind: input, shape index: {}]
  %s9 = inlined_call_operand.vmem [shape: bf16[8,128], index: 9, kind: output, shape index: {}]
  %s10 = sld [smem:[#allocation0]]
  $region54: #{gesture_forward.1} parent=0
    _
  %s12 = ssub.s32 1, %s10
  %s13 = scalar_select 0, %s12, %s10
  $region1: #{gesture_forward.1} parent=0
    #allocation2 [shape = 'u8[131072]{0}', space=vmem, size = 0x20000, scoped, tag = 'input window, operand 3, single buffered']
    #allocation3 [shape = 's32[1]{0}', space=sflag, size = 0x4, scoped, tag = 'scoped memory for gesture_forward.1']
    #allocation4 [shape = 'u8[32768]{0}', space=vmem, size = 0x8000, scoped, tag = 'input window, operand 7, single buffered']
    #allocation5 [shape = 's32[1]{0}', space=sflag, size = 0x4, scoped, tag = 'scoped memory for gesture_forward.1']
    %14 = vsyncpa [#allocation3], 0
    %15 = vsyncpa [#allocation5], 0
    // Predicated region
    $region2: #{gesture_forward.1} parent=1 // pred_check
      _
    $region3: #{gesture_forward.1} parent=1 // pred_check_branch
      %17 = sbr.rel (0) target = $region5
    $region4: #{gesture_forward.1} parent=1 // pred_region
      _
    $region5: #{gesture_forward.1} parent=1 // pred_fallthru
      _
    // Predicated region
    $region6: #{gesture_forward.1} parent=1 // pred_check
      _
    $region7: #{gesture_forward.1} parent=1 // pred_check_branch
      %19 = sbr.rel (0) target = $region9
    $region8: #{gesture_forward.1} parent=1 // pred_region
      _
    $region9: #{gesture_forward.1} parent=1 // pred_fallthru
      _
    // Predicated region
    $region10: #{gesture_forward.1} parent=1 // pred_check
      _
    $region11: #{gesture_forward.1} parent=1 // pred_check_branch
      %21 = sbr.rel (0) target = $region13
    $region12: #{gesture_forward.1} parent=1 // pred_region
      _
    $region13: #{gesture_forward.1} parent=1 // pred_fallthru
      _
    // Predicated region
    $region14: #{gesture_forward.1} parent=1 // pred_check
      _
    $region15: #{gesture_forward.1} parent=1 // pred_check_branch
      %23 = sbr.rel (0) target = $region17
    $region16: #{gesture_forward.1} parent=1 // pred_region
      %s25 = ssub.s32 4096, 4096
      %26 = vsyncadd [#allocation3], %s25
      %s27 = sshll.u32 [#allocation2], 4
      %s28 = int_to_ptr.vmem [resolvable:$true] %s27
      %33 = dma.hbm_to_vmem [thread:$0]  %s3, 4096, %s28, [#allocation3], 64, 64, 4
    $region17: #{gesture_forward.1} parent=1 // pred_fallthru
      _
    // Predicated region
    $region18: #{gesture_forward.1} parent=1 // pred_check
      _
    $region19: #{gesture_forward.1} parent=1 // pred_check_branch
      %35 = sbr.rel (0) target = $region21
    $region20: #{gesture_forward.1} parent=1 // pred_region
      _
    $region21: #{gesture_forward.1} parent=1 // pred_fallthru
      _
    // Predicated region
    $region22: #{gesture_forward.1} parent=1 // pred_check
      _
    $region23: #{gesture_forward.1} parent=1 // pred_check_branch
      %37 = sbr.rel (0) target = $region25
    $region24: #{gesture_forward.1} parent=1 // pred_region
      _
    $region25: #{gesture_forward.1} parent=1 // pred_fallthru
      _
    // Predicated region
    $region26: #{gesture_forward.1} parent=1 // pred_check
      _
    $region27: #{gesture_forward.1} parent=1 // pred_check_branch
      %39 = sbr.rel (0) target = $region29
    $region28: #{gesture_forward.1} parent=1 // pred_region
      _
    $region29: #{gesture_forward.1} parent=1 // pred_fallthru
      _
    // Predicated region
    $region30: #{gesture_forward.1} parent=1 // pred_check
      _
    $region31: #{gesture_forward.1} parent=1 // pred_check_branch
      %41 = sbr.rel (0) target = $region33
    $region32: #{gesture_forward.1} parent=1 // pred_region
      %s43 = ssub.s32 1024, 1024
      %44 = vsyncadd [#allocation5], %s43
      %s45 = sshll.u32 [#allocation4], 4
      %s46 = int_to_ptr.vmem [resolvable:$true] %s45
      %51 = dma.hbm_to_vmem [thread:$0]  %s7, 1024, %s46, [#allocation5], 64, 64, 4
    $region33: #{gesture_forward.1} parent=1 // pred_fallthru
      _
    // Predicated region
    $region34: #{gesture_forward.1} parent=1 // pred_check
      _
    $region35: #{gesture_forward.1} parent=1 // pred_check_branch
      %53 = sbr.rel (0) target = $region37
    $region36: #{gesture_forward.1} parent=1 // pred_region
      _
    $region37: #{gesture_forward.1} parent=1 // pred_fallthru
      _
    // Predicated region
    $region38: #{gesture_forward.1} parent=1 // pred_check
      _
    $region39: #{gesture_forward.1} parent=1 // pred_check_branch
      %55 = sbr.rel (0) target = $region41
    $region40: #{gesture_forward.1} parent=1 // pred_region
      %56 = dma.done [#allocation3], 4096
    $region41: #{gesture_forward.1} parent=1 // pred_fallthru
      _
    // Predicated region
    $region42: #{gesture_forward.1} parent=1 // pred_check
      _
    $region43: #{gesture_forward.1} parent=1 // pred_check_branch
      %58 = sbr.rel (0) target = $region45
    $region44: #{gesture_forward.1} parent=1 // pred_region
      %59 = dma.done [#allocation5], 1024
    $region45: #{gesture_forward.1} parent=1 // pred_fallthru
      _
    %v61 = vld [vmem:[%s0] sm:$0xff]
    %v62 = vld [vmem:[%s1] sm:$0xff]
    %v63 = vld [vmem:[%s1 + $0x8] sm:$0xff]
    %v64 = vld [vmem:[%s1 + $0x10] sm:$0xff]
    %v65 = vld [vmem:[%s1 + $0x18] sm:$0xff]
    %v66 = vld [vmem:[%s1 + $0x20] sm:$0xff]
    %v67 = vld [vmem:[%s1 + $0x28] sm:$0xff]
    %v68 = vld [vmem:[%s1 + $0x30] sm:$0xff]
    %v69 = vld [vmem:[%s1 + $0x38] sm:$0xff]
    %v70 = vld [vmem:[%s1 + $0x40] sm:$0xf]
    %v71 = vld [vmem:[%s1 + $0x48] sm:$0xf]
    %v72 = vld [vmem:[%s1 + $0x50] sm:$0xf]
    %v73 = vld [vmem:[%s1 + $0x58] sm:$0xf]
    %v74 = vld [vmem:[%s2] sm:$0xf]
    %v76 = vlaneseq
    %v77 = vshrl.u32 %v76, 7
    %v78 = vsub.s32 0, %v77
    %v79 = vrot.slane %v74, %v78
    %v80 = vlaneseq
    %v81 = vshrl.u32 %v80, 7
    %v82 = vsub.s32 1, %v81
    %v83 = vrot.slane %v74, %v82
    %v84 = vlaneseq
    %v85 = vshrl.u32 %v84, 7
    %v86 = vsub.s32 2, %v85
    %v87 = vrot.slane %v74, %v86
    %v88 = vlaneseq
    %v89 = vshrl.u32 %v88, 7
    %v90 = vsub.s32 3, %v89
    %v91 = vrot.slane %v74, %v90
    %vm96 = vcmask 162816
    %v98 = vsel %vm96, %v61, 0
    %vm100 = vcmask 1043456
    %v102 = vsel %vm100, %v70, 0
    %v105 = vsel %vm100, %v71, 0
    %v108 = vsel %vm100, %v72, 0
    %v111 = vsel %vm100, %v73, 0
    %113 = vmatprep.subr.mxu0 %v63
    %114 = vmatpush1.msra.mxu0 %v62
    %115 = vmatprep.subr.mxu0 %v67
    %116 = vmatpush1.msra.mxu0 %v66
    %117 = vmatprep.subr.mxu0 %v105
    %118 = vmatpush1.msra.mxu0 %v102
    %119 = vmatprep.subr.mxu0 0.0
    %120 = vmatpush1.msra.mxu0 0.0
    %121 = vmatprep.subr.mxu0 0.0
    %122 = vmatpush1.msra.mxu0 0.0
    %123 = vmatprep.subr.mxu0 0.0
    %124 = vmatpush1.msra.mxu0 0.0
    %125 = vmatprep.subr.mxu0 0.0
    %126 = vmatpush1.msra.mxu0 0.0
    %127 = vmatprep.subr.mxu0 0.0
    %128 = vmatpush1.msra.mxu0 0.0
    %129 = vmatprep.subr.mxu0 0.0
    %130 = vmatpush1.msra.mxu0 0.0
    %131 = vmatprep.subr.mxu0 0.0
    %132 = vmatpush1.msra.mxu0 0.0
    %133 = vmatprep.subr.mxu0 0.0
    %134 = vmatpush1.msra.mxu0 0.0
    %135 = vmatprep.subr.mxu0 0.0
    %136 = vmatpush1.msra.mxu0 0.0
    %137 = vmatprep.subr.mxu0 0.0
    %138 = vmatpush1.msra.mxu0 0.0
    %139 = vmatprep.subr.mxu0 0.0
    %140 = vmatpush1.msra.mxu0 0.0
    %141 = vmatprep.subr.mxu0 0.0
    %142 = vmatpush1.msra.mxu0 0.0
    %143 = vmatprep.subr.mxu0 0.0
    %144 = vmatpush1.msra.mxu0 0.0
    %145 = vmatprep.subr.mxu0 0.0
    %146 = vmatpush1.msra.mxu0 0.0
    %147 = vmatprep.subr.mxu0 0.0
    %148 = vmatpush1.msra.mxu0 0.0
    %149 = vmatprep.subr.mxu0 0.0
    %150 = vmatpush1.msra.mxu0 0.0
    %151 = vmatprep.subr.mxu0 0.0
    %152 = vmatpush1.msra.mxu0 0.0
    %153 = vmatprep.subr.mxu0 0.0
    %154 = vmatpush1.msra.mxu0 0.0
    %155 = vmatprep.subr.mxu0 0.0
    %156 = vmatpush1.msra.mxu0 0.0
    %157 = vmatprep.subr.mxu0 0.0
    %158 = vmatpush1.msra.mxu0 0.0
    %159 = vmatprep.subr.mxu0 0.0
    %160 = vmatpush1.msra.mxu0 0.0
    %161 = vmatprep.subr.mxu0 0.0
    %162 = vmatpush1.msra.mxu0 0.0
    %163 = vmatprep.subr.mxu0 0.0
    %164 = vmatpush1.msra.mxu0 0.0
    %165 = vmatprep.subr.mxu0 0.0
    %166 = vmatpush1.msra.mxu0 0.0
    %167 = vmatprep.subr.mxu0 0.0
    %168 = vmatpush1.msra.mxu0 0.0
    %169 = vmatprep.subr.mxu0 0.0
    %170 = vmatpush1.msra.mxu0 0.0
    %171 = vmatprep.subr.mxu0 0.0
    %172 = vmatpush1.msra.mxu0 0.0
    %173 = vmatprep.subr.mxu0 0.0
    %174 = vmatpush1.msra.mxu0 0.0
    %175 = vmatprep.subr.mxu0 0.0
    %176 = vmatpush1.msra.mxu0 0.0
    %177 = vmatprep.mubr.f32.mxu0 0.0
    %178 = vmatmul.mubr.f32.gmra.mrb[0].mxu0 %v98
    %v179 = vpop.f32.mrb[0].mxu0
    %v180 = vadd.f32 %v79, %v179
    %v181 = vpop.f32.mrb[0].mxu0
    %v182 = vadd.f32 %v83, %v181
    %183 = vdwg.mxu0
    %184 = vmatprep.subr.mxu0 %v65
    %185 = vmatpush1.msra.mxu0 %v64
    %186 = vmatprep.subr.mxu0 %v69
    %187 = vmatpush1.msra.mxu0 %v68
    %188 = vmatprep.subr.mxu0 %v111
    %189 = vmatpush1.msra.mxu0 %v108
    %190 = vmatprep.subr.mxu0 0.0
    %191 = vmatpush1.msra.mxu0 0.0
    %192 = vmatprep.subr.mxu0 0.0
    %193 = vmatpush1.msra.mxu0 0.0
    %194 = vmatprep.subr.mxu0 0.0
    %195 = vmatpush1.msra.mxu0 0.0
    %196 = vmatprep.subr.mxu0 0.0
    %197 = vmatpush1.msra.mxu0 0.0
    %198 = vmatprep.subr.mxu0 0.0
    %199 = vmatpush1.msra.mxu0 0.0
    %200 = vmatprep.subr.mxu0 0.0
    %201 = vmatpush1.msra.mxu0 0.0
    %202 = vmatprep.subr.mxu0 0.0
    %203 = vmatpush1.msra.mxu0 0.0
    %204 = vmatprep.subr.mxu0 0.0
    %205 = vmatpush1.msra.mxu0 0.0
    %206 = vmatprep.subr.mxu0 0.0
    %207 = vmatpush1.msra.mxu0 0.0
    %208 = vmatprep.subr.mxu0 0.0
    %209 = vmatpush1.msra.mxu0 0.0
    %210 = vmatprep.subr.mxu0 0.0
    %211 = vmatpush1.msra.mxu0 0.0
    %212 = vmatprep.subr.mxu0 0.0
    %213 = vmatpush1.msra.mxu0 0.0
    %214 = vmatprep.subr.mxu0 0.0
    %215 = vmatpush1.msra.mxu0 0.0
    %216 = vmatprep.subr.mxu0 0.0
    %217 = vmatpush1.msra.mxu0 0.0
    %218 = vmatprep.subr.mxu0 0.0
    %219 = vmatpush1.msra.mxu0 0.0
    %220 = vmatprep.subr.mxu0 0.0
    %221 = vmatpush1.msra.mxu0 0.0
    %222 = vmatprep.subr.mxu0 0.0
    %223 = vmatpush1.msra.mxu0 0.0
    %224 = vmatprep.subr.mxu0 0.0
    %225 = vmatpush1.msra.mxu0 0.0
    %226 = vmatprep.subr.mxu0 0.0
    %227 = vmatpush1.msra.mxu0 0.0
    %228 = vmatprep.subr.mxu0 0.0
    %229 = vmatpush1.msra.mxu0 0.0
    %230 = vmatprep.subr.mxu0 0.0
    %231 = vmatpush1.msra.mxu0 0.0
    %232 = vmatprep.subr.mxu0 0.0
    %233 = vmatpush1.msra.mxu0 0.0
    %234 = vmatprep.subr.mxu0 0.0
    %235 = vmatpush1.msra.mxu0 0.0
    %236 = vmatprep.subr.mxu0 0.0
    %237 = vmatpush1.msra.mxu0 0.0
    %238 = vmatprep.subr.mxu0 0.0
    %239 = vmatpush1.msra.mxu0 0.0
    %240 = vmatprep.subr.mxu0 0.0
    %241 = vmatpush1.msra.mxu0 0.0
    %242 = vmatprep.subr.mxu0 0.0
    %243 = vmatpush1.msra.mxu0 0.0
    %244 = vmatprep.subr.mxu0 0.0
    %245 = vmatpush1.msra.mxu0 0.0
    %246 = vmatprep.subr.mxu0 0.0
    %247 = vmatpush1.msra.mxu0 0.0
    %248 = vmatprep.mubr.f32.mxu0 0.0
    %249 = vmatmul.mubr.f32.gmra.mrb[0].mxu0 %v98
    %v250 = vpop.f32.mrb[0].mxu0
    %v251 = vadd.f32 %v87, %v250
    %v252 = vpop.f32.mrb[0].mxu0
    %v253 = vadd.f32 %v91, %v252
    %254 = vdwg.mxu0
    %v255 = vmax.f32 %v180, 0.0
    %v256 = vmax.f32 %v182, 0.0
    %v257 = vmax.f32 %v251, 0.0
    %v258 = vmax.f32 %v253, 0.0
    %v259 = vpack.c.bf16 %v255, %v255
    %v260 = vpack.c.bf16 %v256, %v256
    %v261 = vpack.c.bf16 %v257, %v257
    %v262 = vpack.c.bf16 %v258, %v258
    %v263 = vld [vmem:[#allocation2] sm:$0xf]
    %v264 = vld [vmem:[#allocation2 + $0x4] sm:$0xf]
    %v265 = vld [vmem:[#allocation2 + $0x8] sm:$0xf]
    %v266 = vld [vmem:[#allocation2 + $0xc] sm:$0xf]
    %v267 = vld [vmem:[#allocation2 + $0x10] sm:$0xf]
    %v268 = vld [vmem:[#allocation2 + $0x14] sm:$0xf]
    %v269 = vld [vmem:[#allocation2 + $0x18] sm:$0xf]
    %v270 = vld [vmem:[#allocation2 + $0x1c] sm:$0xf]
    %v271 = vld [vmem:[#allocation2 + $0x20] sm:$0xf]
    %v272 = vld [vmem:[#allocation2 + $0x24] sm:$0xf]
    %v273 = vld [vmem:[#allocation2 + $0x28] sm:$0xf]
    %v274 = vld [vmem:[#allocation2 + $0x2c] sm:$0xf]
    %v275 = vld [vmem:[#allocation2 + $0x30] sm:$0xf]
    %v276 = vld [vmem:[#allocation2 + $0x34] sm:$0xf]
    %v277 = vld [vmem:[#allocation2 + $0x38] sm:$0xf]
    %v278 = vld [vmem:[#allocation2 + $0x3c] sm:$0xf]
    %v279 = vld [vmem:[#allocation2 + $0x40] sm:$0xf]
    %v280 = vld [vmem:[#allocation2 + $0x44] sm:$0xf]
    %v281 = vld [vmem:[#allocation2 + $0x48] sm:$0xf]
    %v282 = vld [vmem:[#allocation2 + $0x4c] sm:$0xf]
    %v283 = vld [vmem:[#allocation2 + $0x50] sm:$0xf]
    %v284 = vld [vmem:[#allocation2 + $0x54] sm:$0xf]
    %v285 = vld [vmem:[#allocation2 + $0x58] sm:$0xf]
    %v286 = vld [vmem:[#allocation2 + $0x5c] sm:$0xf]
    %v287 = vld [vmem:[#allocation2 + $0x60] sm:$0xf]
    %v288 = vld [vmem:[#allocation2 + $0x64] sm:$0xf]
    %v289 = vld [vmem:[#allocation2 + $0x68] sm:$0xf]
    %v290 = vld [vmem:[#allocation2 + $0x6c] sm:$0xf]
    %v291 = vld [vmem:[#allocation2 + $0x70] sm:$0xf]
    %v292 = vld [vmem:[#allocation2 + $0x74] sm:$0xf]
    %v293 = vld [vmem:[#allocation2 + $0x78] sm:$0xf]
    %v294 = vld [vmem:[#allocation2 + $0x7c] sm:$0xf]
    %v295 = vld [vmem:[#allocation2 + $0x80] sm:$0xf]
    %v296 = vld [vmem:[#allocation2 + $0x84] sm:$0xf]
    %v297 = vld [vmem:[#allocation2 + $0x88] sm:$0xf]
    %v298 = vld [vmem:[#allocation2 + $0x8c] sm:$0xf]
    %v299 = vld [vmem:[#allocation2 + $0x90] sm:$0xf]
    %v300 = vld [vmem:[#allocation2 + $0x94] sm:$0xf]
    %v301 = vld [vmem:[#allocation2 + $0x98] sm:$0xf]
    %v302 = vld [vmem:[#allocation2 + $0x9c] sm:$0xf]
    %v303 = vld [vmem:[#allocation2 + $0xa0] sm:$0xf]
    %v304 = vld [vmem:[#allocation2 + $0xa4] sm:$0xf]
    %v305 = vld [vmem:[#allocation2 + $0xa8] sm:$0xf]
    %v306 = vld [vmem:[#allocation2 + $0xac] sm:$0xf]
    %v307 = vld [vmem:[#allocation2 + $0xb0] sm:$0xf]
    %v308 = vld [vmem:[#allocation2 + $0xb4] sm:$0xf]
    %v309 = vld [vmem:[#allocation2 + $0xb8] sm:$0xf]
    %v310 = vld [vmem:[#allocation2 + $0xbc] sm:$0xf]
    %v311 = vld [vmem:[#allocation2 + $0xc0] sm:$0xf]
    %v312 = vld [vmem:[#allocation2 + $0xc4] sm:$0xf]
    %v313 = vld [vmem:[#allocation2 + $0xc8] sm:$0xf]
    %v314 = vld [vmem:[#allocation2 + $0xcc] sm:$0xf]
    %v315 = vld [vmem:[#allocation2 + $0xd0] sm:$0xf]
    %v316 = vld [vmem:[#allocation2 + $0xd4] sm:$0xf]
    %v317 = vld [vmem:[#allocation2 + $0xd8] sm:$0xf]
    %v318 = vld [vmem:[#allocation2 + $0xdc] sm:$0xf]
    %v319 = vld [vmem:[#allocation2 + $0xe0] sm:$0xf]
    %v320 = vld [vmem:[#allocation2 + $0xe4] sm:$0xf]
    %v321 = vld [vmem:[#allocation2 + $0xe8] sm:$0xf]
    %v322 = vld [vmem:[#allocation2 + $0xec] sm:$0xf]
    %v323 = vld [vmem:[#allocation2 + $0xf0] sm:$0xf]
    %v324 = vld [vmem:[#allocation2 + $0xf4] sm:$0xf]
    %v325 = vld [vmem:[#allocation2 + $0xf8] sm:$0xf]
    %v326 = vld [vmem:[#allocation2 + $0xfc] sm:$0xf]
    %v327 = vld [vmem:[%s4] sm:$0x1]
    %v329 = vlaneseq
    %v330 = vshrl.u32 %v329, 7
    %v331 = vsub.s32 0, %v330
    %v332 = vrot.slane %v327, %v331
    %v398 = vunpack.c.l.b16 %v263
    %v399 = vunpack.c.l.b16 %v264
    %v400 = vunpack.c.l.b16 %v265
    %v401 = vunpack.c.l.b16 %v266
    %v402 = vunpack.c.l.b16 %v267
    %v403 = vunpack.c.l.b16 %v268
    %v404 = vunpack.c.l.b16 %v269
    %v405 = vunpack.c.l.b16 %v270
    %v406 = vunpack.c.l.b16 %v271
    %v407 = vunpack.c.l.b16 %v272
    %v408 = vunpack.c.l.b16 %v273
    %v409 = vunpack.c.l.b16 %v274
    %v410 = vunpack.c.l.b16 %v275
    %v411 = vunpack.c.l.b16 %v276
    %v412 = vunpack.c.l.b16 %v277
    %v413 = vunpack.c.l.b16 %v278
    %v414 = vunpack.c.l.b16 %v279
    %v415 = vunpack.c.l.b16 %v280
    %v416 = vunpack.c.l.b16 %v281
    %v417 = vunpack.c.l.b16 %v282
    %v418 = vunpack.c.l.b16 %v283
    %v419 = vunpack.c.l.b16 %v284
    %v420 = vunpack.c.l.b16 %v285
    %v421 = vunpack.c.l.b16 %v286
    %v422 = vunpack.c.l.b16 %v287
    %v423 = vunpack.c.l.b16 %v288
    %v424 = vunpack.c.l.b16 %v289
    %v425 = vunpack.c.l.b16 %v290
    %v426 = vunpack.c.l.b16 %v291
    %v427 = vunpack.c.l.b16 %v292
    %v428 = vunpack.c.l.b16 %v293
    %v429 = vunpack.c.l.b16 %v294
    %v430 = vunpack.c.l.b16 %v295
    %v431 = vunpack.c.l.b16 %v296
    %v432 = vunpack.c.l.b16 %v297
    %v433 = vunpack.c.l.b16 %v298
    %v434 = vunpack.c.l.b16 %v299
    %v435 = vunpack.c.l.b16 %v300
    %v436 = vunpack.c.l.b16 %v301
    %v437 = vunpack.c.l.b16 %v302
    %v438 = vunpack.c.l.b16 %v303
    %v439 = vunpack.c.l.b16 %v304
    %v440 = vunpack.c.l.b16 %v305
    %v441 = vunpack.c.l.b16 %v306
    %v442 = vunpack.c.l.b16 %v307
    %v443 = vunpack.c.l.b16 %v308
    %v444 = vunpack.c.l.b16 %v309
    %v445 = vunpack.c.l.b16 %v310
    %v446 = vunpack.c.l.b16 %v311
    %v447 = vunpack.c.l.b16 %v312
    %v448 = vunpack.c.l.b16 %v313
    %v449 = vunpack.c.l.b16 %v314
    %v450 = vunpack.c.l.b16 %v315
    %v451 = vunpack.c.l.b16 %v316
    %v452 = vunpack.c.l.b16 %v317
    %v453 = vunpack.c.l.b16 %v318
    %v454 = vunpack.c.l.b16 %v319
    %v455 = vunpack.c.l.b16 %v320
    %v456 = vunpack.c.l.b16 %v321
    %v457 = vunpack.c.l.b16 %v322
    %v458 = vunpack.c.l.b16 %v323
    %v459 = vunpack.c.l.b16 %v324
    %v460 = vunpack.c.l.b16 %v325
    %v461 = vunpack.c.l.b16 %v326
    %v462 = vpack.c.b16 %v399, %v398
    %v463 = vpack.c.b16 %v401, %v400
    %v464 = vpack.c.b16 %v403, %v402
    %v465 = vpack.c.b16 %v405, %v404
    %v466 = vpack.c.b16 %v407, %v406
    %v467 = vpack.c.b16 %v409, %v408
    %v468 = vpack.c.b16 %v411, %v410
    %v469 = vpack.c.b16 %v413, %v412
    %v470 = vpack.c.b16 %v415, %v414
    %v471 = vpack.c.b16 %v417, %v416
    %v472 = vpack.c.b16 %v419, %v418
    %v473 = vpack.c.b16 %v421, %v420
    %v474 = vpack.c.b16 %v423, %v422
    %v475 = vpack.c.b16 %v425, %v424
    %v476 = vpack.c.b16 %v427, %v426
    %v477 = vpack.c.b16 %v429, %v428
    %v478 = vpack.c.b16 %v431, %v430
    %v479 = vpack.c.b16 %v433, %v432
    %v480 = vpack.c.b16 %v435, %v434
    %v481 = vpack.c.b16 %v437, %v436
    %v482 = vpack.c.b16 %v439, %v438
    %v483 = vpack.c.b16 %v441, %v440
    %v484 = vpack.c.b16 %v443, %v442
    %v485 = vpack.c.b16 %v445, %v444
    %v486 = vpack.c.b16 %v447, %v446
    %v487 = vpack.c.b16 %v449, %v448
    %v488 = vpack.c.b16 %v451, %v450
    %v489 = vpack.c.b16 %v453, %v452
    %v490 = vpack.c.b16 %v455, %v454
    %v491 = vpack.c.b16 %v457, %v456
    %v492 = vpack.c.b16 %v459, %v458
    %v493 = vpack.c.b16 %v461, %v460
    %526 = vmatprep.subr.bf16.mxu0 0
    %527 = vmatpush1.bf16.msra.mxu0 %v462
    %528 = vmatprep.subr.bf16.mxu0 0
    %529 = vmatpush1.bf16.msra.mxu0 %v463
    %530 = vmatprep.subr.bf16.mxu0 0
    %531 = vmatpush1.bf16.msra.mxu0 %v464
    %532 = vmatprep.subr.bf16.mxu0 0
    %533 = vmatpush1.bf16.msra.mxu0 %v465
    %534 = vmatprep.subr.bf16.mxu0 0
    %535 = vmatpush1.bf16.msra.mxu0 %v466
    %536 = vmatprep.subr.bf16.mxu0 0
    %537 = vmatpush1.bf16.msra.mxu0 %v467
    %538 = vmatprep.subr.bf16.mxu0 0
    %539 = vmatpush1.bf16.msra.mxu0 %v468
    %540 = vmatprep.subr.bf16.mxu0 0
    %541 = vmatpush1.bf16.msra.mxu0 %v469
    %542 = vmatprep.subr.bf16.mxu0 0
    %543 = vmatpush1.bf16.msra.mxu0 %v470
    %544 = vmatprep.subr.bf16.mxu0 0
    %545 = vmatpush1.bf16.msra.mxu0 %v471
    %546 = vmatprep.subr.bf16.mxu0 0
    %547 = vmatpush1.bf16.msra.mxu0 %v472
    %548 = vmatprep.subr.bf16.mxu0 0
    %549 = vmatpush1.bf16.msra.mxu0 %v473
    %550 = vmatprep.subr.bf16.mxu0 0
    %551 = vmatpush1.bf16.msra.mxu0 %v474
    %552 = vmatprep.subr.bf16.mxu0 0
    %553 = vmatpush1.bf16.msra.mxu0 %v475
    %554 = vmatprep.subr.bf16.mxu0 0
    %555 = vmatpush1.bf16.msra.mxu0 %v476
    %556 = vmatprep.subr.bf16.mxu0 0
    %557 = vmatpush1.bf16.msra.mxu0 %v477
    %558 = vmatprep.mubr.bf16.mxu0 %v260
    %559 = vmatmul.mubr.bf16.gmra.mrb[0].mxu0 %v259
    %v560 = vpop.f32.mrb[0].mxu0
    %v561 = vadd.f32 %v332, %v560
    %v562 = vpop.f32.mrb[0].mxu0
    %v563 = vpop.f32.mrb[0].mxu0
    %v564 = vpop.f32.mrb[0].mxu0
    %565 = vdwg.mxu0
    %566 = vmatprep.subr.bf16.mxu0 0
    %567 = vmatpush1.bf16.msra.mxu0 %v478
    %568 = vmatprep.subr.bf16.mxu0 0
    %569 = vmatpush1.bf16.msra.mxu0 %v479
    %570 = vmatprep.subr.bf16.mxu0 0
    %571 = vmatpush1.bf16.msra.mxu0 %v480
    %572 = vmatprep.subr.bf16.mxu0 0
    %573 = vmatpush1.bf16.msra.mxu0 %v481
    %574 = vmatprep.subr.bf16.mxu0 0
    %575 = vmatpush1.bf16.msra.mxu0 %v482
    %576 = vmatprep.subr.bf16.mxu0 0
    %577 = vmatpush1.bf16.msra.mxu0 %v483
    %578 = vmatprep.subr.bf16.mxu0 0
    %579 = vmatpush1.bf16.msra.mxu0 %v484
    %580 = vmatprep.subr.bf16.mxu0 0
    %581 = vmatpush1.bf16.msra.mxu0 %v485
    %582 = vmatprep.subr.bf16.mxu0 0
    %583 = vmatpush1.bf16.msra.mxu0 %v486
    %584 = vmatprep.subr.bf16.mxu0 0
    %585 = vmatpush1.bf16.msra.mxu0 %v487
    %586 = vmatprep.subr.bf16.mxu0 0
    %587 = vmatpush1.bf16.msra.mxu0 %v488
    %588 = vmatprep.subr.bf16.mxu0 0
    %589 = vmatpush1.bf16.msra.mxu0 %v489
    %590 = vmatprep.subr.bf16.mxu0 0
    %591 = vmatpush1.bf16.msra.mxu0 %v490
    %592 = vmatprep.subr.bf16.mxu0 0
    %593 = vmatpush1.bf16.msra.mxu0 %v491
    %594 = vmatprep.subr.bf16.mxu0 0
    %595 = vmatpush1.bf16.msra.mxu0 %v492
    %596 = vmatprep.subr.bf16.mxu0 0
    %597 = vmatpush1.bf16.msra.mxu0 %v493
    %598 = vmatprep.mubr.bf16.mxu0 %v262
    %599 = vmatmul.mubr.bf16.gmra.mrb[0].mxu0 %v261
    %v600 = vpop.f32.mrb[0].mxu0
    %v601 = vadd.f32 %v561, %v600
    %v602 = vpop.f32.mrb[0].mxu0
    %v603 = vpop.f32.mrb[0].mxu0
    %v604 = vpop.f32.mrb[0].mxu0
    %605 = vdwg.mxu0
    %v606 = vmax.f32 %v601, 0.0
    %v607 = vpack.c.bf16 %v606, %v606
    %v608 = vld [vmem:[%s5] sm:$0xf]
    %v609 = vld [vmem:[%s5 + $0x4] sm:$0xf]
    %v610 = vld [vmem:[%s5 + $0x8] sm:$0xf]
    %v611 = vld [vmem:[%s5 + $0xc] sm:$0xf]
    %v612 = vld [vmem:[%s5 + $0x10] sm:$0xf]
    %v613 = vld [vmem:[%s5 + $0x14] sm:$0xf]
    %v614 = vld [vmem:[%s5 + $0x18] sm:$0xf]
    %v615 = vld [vmem:[%s5 + $0x1c] sm:$0xf]
    %v616 = vld [vmem:[%s5 + $0x20] sm:$0xf]
    %v617 = vld [vmem:[%s5 + $0x24] sm:$0xf]
    %v618 = vld [vmem:[%s5 + $0x28] sm:$0xf]
    %v619 = vld [vmem:[%s5 + $0x2c] sm:$0xf]
    %v620 = vld [vmem:[%s5 + $0x30] sm:$0xf]
    %v621 = vld [vmem:[%s5 + $0x34] sm:$0xf]
    %v622 = vld [vmem:[%s5 + $0x38] sm:$0xf]
    %v623 = vld [vmem:[%s5 + $0x3c] sm:$0xf]
    %v624 = vld [vmem:[%s6] sm:$0x1]
    %v626 = vlaneseq
    %v627 = vshrl.u32 %v626, 7
    %v628 = vsub.s32 0, %v627
    %v629 = vrot.slane %v624, %v628
    %v647 = vunpack.c.l.b16 %v608
    %v648 = vunpack.c.l.b16 %v609
    %v649 = vunpack.c.l.b16 %v610
    %v650 = vunpack.c.l.b16 %v611
    %v651 = vunpack.c.l.b16 %v612
    %v652 = vunpack.c.l.b16 %v613
    %v653 = vunpack.c.l.b16 %v614
    %v654 = vunpack.c.l.b16 %v615
    %v655 = vunpack.c.l.b16 %v616
    %v656 = vunpack.c.l.b16 %v617
    %v657 = vunpack.c.l.b16 %v618
    %v658 = vunpack.c.l.b16 %v619
    %v659 = vunpack.c.l.b16 %v620
    %v660 = vunpack.c.l.b16 %v621
    %v661 = vunpack.c.l.b16 %v622
    %v662 = vunpack.c.l.b16 %v623
    %v663 = vpack.c.b16 %v648, %v647
    %v664 = vpack.c.b16 %v650, %v649
    %v665 = vpack.c.b16 %v652, %v651
    %v666 = vpack.c.b16 %v654, %v653
    %v667 = vpack.c.b16 %v656, %v655
    %v668 = vpack.c.b16 %v658, %v657
    %v669 = vpack.c.b16 %v660, %v659
    %v670 = vpack.c.b16 %v662, %v661
    %679 = vmatprep.subr.bf16.mxu0 0
    %680 = vmatpush1.bf16.msra.mxu0 %v663
    %681 = vmatprep.subr.bf16.mxu0 0
    %682 = vmatpush1.bf16.msra.mxu0 %v664
    %683 = vmatprep.subr.bf16.mxu0 0
    %684 = vmatpush1.bf16.msra.mxu0 %v665
    %685 = vmatprep.subr.bf16.mxu0 0
    %686 = vmatpush1.bf16.msra.mxu0 %v666
    %687 = vmatprep.subr.bf16.mxu0 0
    %688 = vmatpush1.bf16.msra.mxu0 %v667
    %689 = vmatprep.subr.bf16.mxu0 0
    %690 = vmatpush1.bf16.msra.mxu0 %v668
    %691 = vmatprep.subr.bf16.mxu0 0
    %692 = vmatpush1.bf16.msra.mxu0 %v669
    %693 = vmatprep.subr.bf16.mxu0 0
    %694 = vmatpush1.bf16.msra.mxu0 %v670
    %695 = vmatprep.subr.bf16.mxu0 0
    %696 = vmatpush1.bf16.msra.mxu0 0
    %697 = vmatprep.subr.bf16.mxu0 0
    %698 = vmatpush1.bf16.msra.mxu0 0
    %699 = vmatprep.subr.bf16.mxu0 0
    %700 = vmatpush1.bf16.msra.mxu0 0
    %701 = vmatprep.subr.bf16.mxu0 0
    %702 = vmatpush1.bf16.msra.mxu0 0
    %703 = vmatprep.subr.bf16.mxu0 0
    %704 = vmatpush1.bf16.msra.mxu0 0
    %705 = vmatprep.subr.bf16.mxu0 0
    %706 = vmatpush1.bf16.msra.mxu0 0
    %707 = vmatprep.subr.bf16.mxu0 0
    %708 = vmatpush1.bf16.msra.mxu0 0
    %709 = vmatprep.subr.bf16.mxu0 0
    %710 = vmatpush1.bf16.msra.mxu0 0
    %711 = vmatprep.mubr.bf16.mxu0 0
    %712 = vmatmul.mubr.bf16.gmra.mrb[0].mxu0 %v607
    %v713 = vpop.f32.mrb[0].mxu0
    %v714 = vadd.f32 %v629, %v713
    %v715 = vpop.f32.mrb[0].mxu0
    %v716 = vpop.f32.mrb[0].mxu0
    %v717 = vpop.f32.mrb[0].mxu0
    %718 = vdwg.mxu0
    %v719 = vmax.f32 %v714, 0.0
    %v720 = vpack.c.bf16 %v719, %v719
    %v721 = vld [vmem:[#allocation4] sm:$0xf]
    %v722 = vld [vmem:[#allocation4 + $0x4] sm:$0xf]
    %v723 = vld [vmem:[#allocation4 + $0x8] sm:$0xf]
    %v724 = vld [vmem:[#allocation4 + $0xc] sm:$0xf]
    %v725 = vld [vmem:[#allocation4 + $0x10] sm:$0xf]
    %v726 = vld [vmem:[#allocation4 + $0x14] sm:$0xf]
    %v727 = vld [vmem:[#allocation4 + $0x18] sm:$0xf]
    %v728 = vld [vmem:[#allocation4 + $0x1c] sm:$0xf]
    %v729 = vld [vmem:[#allocation4 + $0x20] sm:$0xf]
    %v730 = vld [vmem:[#allocation4 + $0x24] sm:$0xf]
    %v731 = vld [vmem:[#allocation4 + $0x28] sm:$0xf]
    %v732 = vld [vmem:[#allocation4 + $0x2c] sm:$0xf]
    %v733 = vld [vmem:[#allocation4 + $0x30] sm:$0xf]
    %v734 = vld [vmem:[#allocation4 + $0x34] sm:$0xf]
    %v735 = vld [vmem:[#allocation4 + $0x38] sm:$0xf]
    %v736 = vld [vmem:[#allocation4 + $0x3c] sm:$0xf]
    %v737 = vld [vmem:[%s8] sm:$0x1]
    %v739 = vlaneseq
    %v740 = vshrl.u32 %v739, 7
    %v741 = vsub.s32 0, %v740
    %v742 = vrot.slane %v737, %v741
    %v760 = vunpack.c.l.b16 %v721
    %v761 = vunpack.c.l.b16 %v722
    %v762 = vunpack.c.l.b16 %v723
    %v763 = vunpack.c.l.b16 %v724
    %v764 = vunpack.c.l.b16 %v725
    %v765 = vunpack.c.l.b16 %v726
    %v766 = vunpack.c.l.b16 %v727
    %v767 = vunpack.c.l.b16 %v728
    %v768 = vunpack.c.l.b16 %v729
    %v769 = vunpack.c.l.b16 %v730
    %v770 = vunpack.c.l.b16 %v731
    %v771 = vunpack.c.l.b16 %v732
    %v772 = vunpack.c.l.b16 %v733
    %v773 = vunpack.c.l.b16 %v734
    %v774 = vunpack.c.l.b16 %v735
    %v775 = vunpack.c.l.b16 %v736
    %v776 = vpack.c.b16 %v761, %v760
    %v777 = vpack.c.b16 %v763, %v762
    %v778 = vpack.c.b16 %v765, %v764
    %v779 = vpack.c.b16 %v767, %v766
    %v780 = vpack.c.b16 %v769, %v768
    %v781 = vpack.c.b16 %v771, %v770
    %v782 = vpack.c.b16 %v773, %v772
    %v783 = vpack.c.b16 %v775, %v774
    %792 = vmatprep.subr.bf16.mxu0 0
    %793 = vmatpush1.bf16.msra.mxu0 %v776
    %794 = vmatprep.subr.bf16.mxu0 0
    %795 = vmatpush1.bf16.msra.mxu0 %v777
    %796 = vmatprep.subr.bf16.mxu0 0
    %797 = vmatpush1.bf16.msra.mxu0 %v778
    %798 = vmatprep.subr.bf16.mxu0 0
    %799 = vmatpush1.bf16.msra.mxu0 %v779
    %800 = vmatprep.subr.bf16.mxu0 0
    %801 = vmatpush1.bf16.msra.mxu0 %v780
    %802 = vmatprep.subr.bf16.mxu0 0
    %803 = vmatpush1.bf16.msra.mxu0 %v781
    %804 = vmatprep.subr.bf16.mxu0 0
    %805 = vmatpush1.bf16.msra.mxu0 %v782
    %806 = vmatprep.subr.bf16.mxu0 0
    %807 = vmatpush1.bf16.msra.mxu0 %v783
    %808 = vmatprep.subr.bf16.mxu0 0
    %809 = vmatpush1.bf16.msra.mxu0 0
    %810 = vmatprep.subr.bf16.mxu0 0
    %811 = vmatpush1.bf16.msra.mxu0 0
    %812 = vmatprep.subr.bf16.mxu0 0
    %813 = vmatpush1.bf16.msra.mxu0 0
    %814 = vmatprep.subr.bf16.mxu0 0
    %815 = vmatpush1.bf16.msra.mxu0 0
    %816 = vmatprep.subr.bf16.mxu0 0
    %817 = vmatpush1.bf16.msra.mxu0 0
    %818 = vmatprep.subr.bf16.mxu0 0
    %819 = vmatpush1.bf16.msra.mxu0 0
    %820 = vmatprep.subr.bf16.mxu0 0
    %821 = vmatpush1.bf16.msra.mxu0 0
    %822 = vmatprep.subr.bf16.mxu0 0
    %823 = vmatpush1.bf16.msra.mxu0 0
    %824 = vmatprep.mubr.bf16.mxu0 0
    %825 = vmatmul.mubr.bf16.gmra.mrb[0].mxu0 %v720
    %v826 = vpop.f32.mrb[0].mxu0
    %v827 = vadd.f32 %v742, %v826
    %v828 = vpop.f32.mrb[0].mxu0
    %v829 = vpop.f32.mrb[0].mxu0
    %v830 = vpop.f32.mrb[0].mxu0
    %831 = vdwg.mxu0
    %v832 = vpack.c.bf16 %v827, %v827
    %833 = vst [vmem:[%s9] sm:$0xf] %v832
    // Predicated region
    $region46: #{gesture_forward.1} parent=1 // pred_check
      _
    $region47: #{gesture_forward.1} parent=1 // pred_check_branch
      %835 = sbr.rel (0) target = $region49
    $region48: #{gesture_forward.1} parent=1 // pred_region
      _
    $region49: #{gesture_forward.1} parent=1 // pred_fallthru
      _
    // Predicated region
    $region50: #{gesture_forward.1} parent=1 // pred_check
      _
    $region51: #{gesture_forward.1} parent=1 // pred_check_branch
      %837 = sbr.rel (0) target = $region53
    $region52: #{gesture_forward.1} parent=1 // pred_region
      _
    $region53: #{gesture_forward.1} parent=1 // pred_fallthru
      _
    %838 = vsyncpa [#allocation3], 1
    %839 = vsyncpa [#allocation5], 1

</llo_original>
